<compile_context>
chip_gen: v7x
topology: tpu7x:2x2x1
jax: 0.10.0
libtpu: 0.0.40
codegen_flags: <defaults>
</compile_context>

<pallas_src>
import functools

import jax
import jax.numpy as jnp
from jax.experimental import pallas as pl
from jax.experimental.pallas import tpu as pltpu


def _round_up(x, m):
    return ((x + m - 1) // m) * m


def _ce_reduction_kernel(x_ref, t_ref, loss_ref, ce_acc, ent_acc, *,
                         betta, n_rows, tile_n):
    step = pl.program_id(0)

    @pl.when(step == 0)
    def _init():
        ce_acc[...] = jnp.zeros_like(ce_acc)
        ent_acc[...] = jnp.zeros_like(ent_acc)

    x = x_ref[...].astype(jnp.float32)            # (tile_n, C), f32 in-vreg
    t = t_ref[...]                                # (tile_n, 1) int32

    # Numerically-stable per-row softmax statistics (no p / logp materialized).
    m = jnp.max(x, axis=-1, keepdims=True)        # (tile_n, 1)
    xs = x - m
    ex = jnp.exp(xs)
    denom = jnp.sum(ex, axis=-1, keepdims=True)                 # sum exp(xs)
    s = jnp.sum(ex * xs, axis=-1, keepdims=True)                # sum exp(xs)*xs
    col = jax.lax.broadcasted_iota(jnp.int32, x.shape, 1)
    tgt = jnp.sum(jnp.where(col == t, xs, 0.0), axis=-1, keepdims=True)

    logd = jnp.log(denom)
    inv_d = pl.reciprocal(denom)                  # exact path keeps 1e-5 tolerance
    ent_rows = logd - s * inv_d                   # = sum_c -p*logp per row
    ce_rows = logd - tgt                          # = -log_softmax(x)[target] per row

    # Mask padded rows of the (possibly partial) last tile.
    row = jax.lax.broadcasted_iota(jnp.int32, (tile_n, 1), 0)
    valid = (step * tile_n + row) < n_rows
    ent_rows = jnp.where(valid, ent_rows, 0.0)
    ce_rows = jnp.where(valid, ce_rows, 0.0)

    ce_acc[...] += jnp.sum(ce_rows)
    ent_acc[...] += jnp.sum(ent_rows)

    @pl.when(step == pl.num_programs(0) - 1)
    def _finalize():
        ce = ce_acc[...] / jnp.float32(n_rows)    # mean over true N
        loss = ce - jnp.float32(betta) * ent_acc[...]
        loss_ref[...] = jnp.maximum(loss, 0.0)


def cross_entropy_reduction(output, target, betta=0.001, tile_n=None):
    """output: (N, C) float logits (any float dtype), target: (N,) int class ids."""
    n, c = output.shape
    t2 = target.astype(jnp.int32).reshape(n, 1)

    itemsize = jnp.dtype(output.dtype).itemsize
    # Sublane multiple for the logits dtype (8 for f32, 16 for bf16, 32 for 8-bit).
    sub = max(8, 32 // max(itemsize, 1))

    if tile_n is None:
        # Target ~2 MiB per logits block (double-buffered -> ~4 MiB of input
        # buffers): comfortably inside the scoped VMEM limit on all generations
        # (incl. v7x's smaller VMEM) while keeping DMAs large.
        bytes_per_row = c * itemsize
        tile_n = max(sub, min(512, (2 * 1024 * 1024) // max(bytes_per_row, 1)))
    tile_n = min(tile_n, _round_up(n, sub))
    tile_n = max(sub, (tile_n // sub) * sub)

    grid = (pl.cdiv(n, tile_n),)
    kernel = functools.partial(
        _ce_reduction_kernel, betta=float(betta), n_rows=n, tile_n=tile_n)

    out = pl.pallas_call(
        kernel,
        out_shape=jax.ShapeDtypeStruct((1, 1), jnp.float32),
        grid=grid,
        in_specs=[
            pl.BlockSpec((tile_n, c), lambda i: (i, 0)),   # logits, native dtype
            pl.BlockSpec((tile_n, 1), lambda i: (i, 0)),   # targets
        ],
        out_specs=pl.BlockSpec((1, 1), lambda i: (0, 0)),  # resident accumulator tile
        scratch_shapes=[
            pltpu.VMEM((1, 1), jnp.float32),               # running CE sum
            pltpu.VMEM((1, 1), jnp.float32),               # running entropy sum
        ],
        compiler_params=pltpu.CompilerParams(
            dimension_semantics=("arbitrary",),            # reduction axis
        ),
    )(output, t2)
    return out[0, 0]


def _reference(output, target, betta=0.001):
    x = output.astype(jnp.float32)
    logp = jax.nn.log_softmax(x, axis=-1)
    p = jax.nn.softmax(x, axis=-1)
    entropy = jnp.sum(-p * logp)
    ce = -jnp.mean(jnp.take_along_axis(logp, target[:, None], axis=-1))
    return jnp.maximum(ce - betta * entropy, 0.0)


if __name__ == "__main__":
    key = jax.random.PRNGKey(0)
    k1, k2, k3, k4, k5, k6 = jax.random.split(key, 6)

    # Case 1: small f32, single tile.
    N, C = 8, 32
    output = jax.random.normal(k1, (N, C), dtype=jnp.float32)
    target = jax.random.randint(k2, (N,), 0, C, dtype=jnp.int32)
    loss = cross_entropy_reduction(output, target, betta=0.001)
    jax.block_until_ready(loss)
    ref = _reference(output, target, betta=0.001)
    assert jnp.allclose(loss, ref, atol=1e-5, rtol=1e-5), (loss, ref)

    # Case 2: multi-step grid with a partial (masked) last tile.
    N2, C2 = 20, 32
    output2 = jax.random.normal(k3, (N2, C2), dtype=jnp.float32)
    target2 = jax.random.randint(k4, (N2,), 0, C2, dtype=jnp.int32)
    loss2 = cross_entropy_reduction(output2, target2, betta=0.001, tile_n=8)
    jax.block_until_ready(loss2)
    ref2 = _reference(output2, target2, betta=0.001)
    assert jnp.allclose(loss2, ref2, atol=1e-5, rtol=1e-5), (loss2, ref2)

    # Case 3: bf16 logits read directly from HBM (no wrapper f32 cast).
    N3, C3 = 16, 32
    output3 = jax.random.normal(k5, (N3, C3), dtype=jnp.float32).astype(jnp.bfloat16)
    target3 = jax.random.randint(k6, (N3,), 0, C3, dtype=jnp.int32)
    loss3 = cross_entropy_reduction(output3, target3, betta=0.001)
    jax.block_until_ready(loss3)
    ref3 = _reference(output3, target3, betta=0.001)
    assert jnp.allclose(loss3, ref3, atol=1e-4, rtol=1e-4), (loss3, ref3)

    print("KERNEL_OK")
</pallas_src>

<mosaic_0001>
module attributes {stable_mosaic.version = 11 : i64} {
  func.func @_ce_reduction_kernel(%arg0: i32, %arg1: memref<8x32xf32, #tpu.memory_space<vmem>>, %arg2: memref<8x1xi32, #tpu.memory_space<vmem>>, %arg3: memref<1x1xf32, #tpu.memory_space<vmem>>, %arg4: memref<1x1xf32, #tpu.memory_space<vmem>>, %arg5: memref<1x1xf32, #tpu.memory_space<vmem>>) attributes {dimension_semantics = [#tpu.dimension_semantics<arbitrary>], iteration_bounds = array<i64: 1>, scalar_prefetch = 0 : i64, scratch_operands = 2 : i64, tpu.core_type = #tpu.core_type<tc>, window_params = [{transform_indices = @transform_0, window_bounds = array<i64: 8, 32>}, {transform_indices = @transform_1, window_bounds = array<i64: 8, 1>}, {pipeline_mode = #tpu.pipeline_mode<synchronous>, transform_indices = @transform_2, window_bounds = array<i64: 1, 1>}]} {
    %c0_i32 = arith.constant 0 : i32
    %0 = arith.cmpi eq, %arg0, %c0_i32 : i32
    %1 = arith.extui %0 : i1 to i32
    %c0_i32_0 = arith.constant 0 : i32
    %2 = arith.cmpi ne, %1, %c0_i32_0 : i32
    scf.if %2 {
      %cst_23 = arith.constant 0.000000e+00 : f32
      %56 = vector.broadcast %cst_23 : f32 to vector<1x1xf32>
      %c0_24 = arith.constant 0 : index
      %c0_25 = arith.constant 0 : index
      %57 = vector.load %arg4[%c0_24, %c0_25] : memref<1x1xf32, #tpu.memory_space<vmem>>, vector<1x1xf32>
      tpu.vector_store %arg4[%c0_24, %c0_25], %56 {strides = array<i32>} : memref<1x1xf32, #tpu.memory_space<vmem>>, vector<1x1xf32>,
      %cst_26 = arith.constant 0.000000e+00 : f32
      %58 = vector.broadcast %cst_26 : f32 to vector<1x1xf32>
      %c0_27 = arith.constant 0 : index
      %c0_28 = arith.constant 0 : index
      %59 = vector.load %arg5[%c0_27, %c0_28] : memref<1x1xf32, #tpu.memory_space<vmem>>, vector<1x1xf32>
      tpu.vector_store %arg5[%c0_27, %c0_28], %58 {strides = array<i32>} : memref<1x1xf32, #tpu.memory_space<vmem>>, vector<1x1xf32>,
    } else {
    }
    %c0 = arith.constant 0 : index
    %c0_1 = arith.constant 0 : index
    %3 = vector.load %arg1[%c0, %c0_1] : memref<8x32xf32, #tpu.memory_space<vmem>>, vector<8x32xf32>
    %c0_2 = arith.constant 0 : index
    %c0_3 = arith.constant 0 : index
    %4 = vector.load %arg2[%c0_2, %c0_3] : memref<8x1xi32, #tpu.memory_space<vmem>>, vector<8x1xi32>
    %cst = arith.constant dense<0xFF800000> : vector<8xf32>
    %5 = vector.multi_reduction <maximumf>, %3, %cst [1] : vector<8x32xf32> to vector<8xf32>
    %6 = vector.shape_cast %5 : vector<8xf32> to vector<8x1xf32>
    %7 = vector.broadcast %6 : vector<8x1xf32> to vector<8x32xf32>
    %8 = arith.subf %3, %7 : vector<8x32xf32>
    %9 = math.exp %8 : vector<8x32xf32>
    %cst_4 = arith.constant dense<0.000000e+00> : vector<8xf32>
    %10 = vector.multi_reduction <add>, %9, %cst_4 [1] : vector<8x32xf32> to vector<8xf32>
    %11 = vector.shape_cast %10 : vector<8xf32> to vector<8x1xf32>
    %12 = arith.mulf %9, %8 : vector<8x32xf32>
    %cst_5 = arith.constant dense<0.000000e+00> : vector<8xf32>
    %13 = vector.multi_reduction <add>, %12, %cst_5 [1] : vector<8x32xf32> to vector<8xf32>
    %14 = vector.shape_cast %13 : vector<8xf32> to vector<8x1xf32>
    %15 = tpu.iota {dimensions = array<i32: 1>} : vector<8x32xi32>
    %16 = vector.broadcast %4 : vector<8x1xi32> to vector<8x32xi32>
    %17 = arith.cmpi eq, %15, %16 : vector<8x32xi32>
    %cst_6 = arith.constant 0.000000e+00 : f32
    %18 = vector.broadcast %cst_6 : f32 to vector<8x32xf32>
    %19 = arith.select %17, %8, %18 : vector<8x32xi1>, vector<8x32xf32>
    %cst_7 = arith.constant dense<0.000000e+00> : vector<8xf32>
    %20 = vector.multi_reduction <add>, %19, %cst_7 [1] : vector<8x32xf32> to vector<8xf32>
    %21 = vector.shape_cast %20 : vector<8xf32> to vector<8x1xf32>
    %22 = math.log %11 : vector<8x1xf32>
    %23 = tpu.reciprocal %11 : vector<8x1xf32> -> vector<8x1xf32>
    %24 = arith.mulf %14, %23 : vector<8x1xf32>
    %25 = arith.subf %22, %24 : vector<8x1xf32>
    %26 = arith.subf %22, %21 : vector<8x1xf32>
    %27 = tpu.iota {dimensions = array<i32: 0>} : vector<8x1xi32>
    %c8_i32 = arith.constant 8 : i32
    %28 = arith.muli %arg0, %c8_i32 : i32
    %29 = vector.broadcast %28 : i32 to vector<8x1xi32>
    %30 = arith.addi %29, %27 : vector<8x1xi32>
    %c8_i32_8 = arith.constant 8 : i32
    %31 = vector.broadcast %c8_i32_8 : i32 to vector<8x1xi32>
    %32 = arith.cmpi slt, %30, %31 : vector<8x1xi32>
    %cst_9 = arith.constant 0.000000e+00 : f32
    %33 = vector.broadcast %cst_9 : f32 to vector<8x1xf32>
    %34 = arith.select %32, %25, %33 : vector<8x1xi1>, vector<8x1xf32>
    %cst_10 = arith.constant 0.000000e+00 : f32
    %35 = vector.broadcast %cst_10 : f32 to vector<8x1xf32>
    %36 = arith.select %32, %26, %35 : vector<8x1xi1>, vector<8x1xf32>
    %c0_11 = arith.constant 0 : index
    %c0_12 = arith.constant 0 : index
    %37 = vector.load %arg4[%c0_11, %c0_12] : memref<1x1xf32, #tpu.memory_space<vmem>>, vector<1x1xf32>
    %38 = vector.shape_cast %36 : vector<8x1xf32> to vector<1x8x1xf32>
    %cst_13 = arith.constant dense<0.000000e+00> : vector<1xf32>
    %39 = vector.multi_reduction <add>, %38, %cst_13 [1, 2] : vector<1x8x1xf32> to vector<1xf32>
    %40 = vector.shape_cast %39 : vector<1xf32> to vector<1x1x1xf32>
    %41 = vector.extract %40[0, 0, 0] : f32 from vector<1x1x1xf32>
    %42 = vector.broadcast %41 : f32 to vector<1x1xf32>
    %43 = arith.addf %37, %42 : vector<1x1xf32>
    %c0_14 = arith.constant 0 : index
    %c0_15 = arith.constant 0 : index
    %44 = vector.load %arg4[%c0_14, %c0_15] : memref<1x1xf32, #tpu.memory_space<vmem>>, vector<1x1xf32>
    tpu.vector_store %arg4[%c0_14, %c0_15], %43 {strides = array<i32>} : memref<1x1xf32, #tpu.memory_space<vmem>>, vector<1x1xf32>,
    %c0_16 = arith.constant 0 : index
    %c0_17 = arith.constant 0 : index
    %45 = vector.load %arg5[%c0_16, %c0_17] : memref<1x1xf32, #tpu.memory_space<vmem>>, vector<1x1xf32>
    %46 = vector.shape_cast %34 : vector<8x1xf32> to vector<1x8x1xf32>
    %cst_18 = arith.constant dense<0.000000e+00> : vector<1xf32>
    %47 = vector.multi_reduction <add>, %46, %cst_18 [1, 2] : vector<1x8x1xf32> to vector<1xf32>
    %48 = vector.shape_cast %47 : vector<1xf32> to vector<1x1x1xf32>
    %49 = vector.extract %48[0, 0, 0] : f32 from vector<1x1x1xf32>
    %50 = vector.broadcast %49 : f32 to vector<1x1xf32>
    %51 = arith.addf %45, %50 : vector<1x1xf32>
    %c0_19 = arith.constant 0 : index
    %c0_20 = arith.constant 0 : index
    %52 = vector.load %arg5[%c0_19, %c0_20] : memref<1x1xf32, #tpu.memory_space<vmem>>, vector<1x1xf32>
    tpu.vector_store %arg5[%c0_19, %c0_20], %51 {strides = array<i32>} : memref<1x1xf32, #tpu.memory_space<vmem>>, vector<1x1xf32>,
    %c0_i32_21 = arith.constant 0 : i32
    %53 = arith.cmpi eq, %arg0, %c0_i32_21 : i32
    %54 = arith.extui %53 : i1 to i32
    %c0_i32_22 = arith.constant 0 : i32
    %55 = arith.cmpi ne, %54, %c0_i32_22 : i32
    scf.if %55 {
      %c0_23 = arith.constant 0 : index
      %c0_24 = arith.constant 0 : index
      %56 = vector.load %arg4[%c0_23, %c0_24] : memref<1x1xf32, #tpu.memory_space<vmem>>, vector<1x1xf32>
      %cst_25 = arith.constant 8.000000e+00 : f32
      %57 = vector.broadcast %cst_25 : f32 to vector<1x1xf32>
      %58 = arith.divf %56, %57 : vector<1x1xf32>
      %c0_26 = arith.constant 0 : index
      %c0_27 = arith.constant 0 : index
      %59 = vector.load %arg5[%c0_26, %c0_27] : memref<1x1xf32, #tpu.memory_space<vmem>>, vector<1x1xf32>
      %cst_28 = arith.constant 1.000000e-03 : f32
      %60 = vector.broadcast %cst_28 : f32 to vector<1x1xf32>
      %61 = arith.mulf %60, %59 : vector<1x1xf32>
      %62 = arith.subf %58, %61 : vector<1x1xf32>
      %cst_29 = arith.constant 0.000000e+00 : f32
      %63 = vector.broadcast %cst_29 : f32 to vector<1x1xf32>
      %64 = arith.maximumf %62, %63 : vector<1x1xf32>
      %c0_30 = arith.constant 0 : index
      %c0_31 = arith.constant 0 : index
      %65 = vector.load %arg3[%c0_30, %c0_31] : memref<1x1xf32, #tpu.memory_space<vmem>>, vector<1x1xf32>
      tpu.vector_store %arg3[%c0_30, %c0_31], %64 {strides = array<i32>} : memref<1x1xf32, #tpu.memory_space<vmem>>, vector<1x1xf32>,
    } else {
    }
    return
  }
  func.func @transform_0(%arg0: i32) -> (i32, i32) {
    %c0_i32 = arith.constant 0 : i32
    %c0_i32_0 = arith.constant 0 : i32
    return %arg0, %c0_i32 : i32, i32
  }
  func.func @transform_1(%arg0: i32) -> (i32, i32) {
    %c0_i32 = arith.constant 0 : i32
    %c0_i32_0 = arith.constant 0 : i32
    return %arg0, %c0_i32 : i32, i32
  }
  func.func @transform_2(%arg0: i32) -> (i32, i32) {
    %c0_i32 = arith.constant 0 : i32
    %c0_i32_0 = arith.constant 0 : i32
    %c0_i32_1 = arith.constant 0 : i32
    return %c0_i32, %c0_i32_0 : i32, i32
  }
}

</mosaic_0001>

<llo_original>
// kernel: tpu_custom_call.1
$region0: #{tpu_custom_call.1}
  #allocation0 [shape = 'u32[]', space=smem, size = 0x4, offset = 0x4, fixed_abs, tag = 'smem constant byte address 0x4 - core index']
  #allocation1 [shape = 'u32[144,128]{1,0:T(1,128)}', space=vmem, size = 0x12000, scoped, tag = 'internal scratch']
  #allocation2 [shape = 'f32[1,1]{1,0:T(1,128)}', space=vmem, size = 0x200, scoped, tag = 'scratch operand']
  #allocation3 [shape = 'f32[1,1]{1,0:T(1,128)}', space=vmem, size = 0x200, scoped, tag = 'scratch operand']
  %s0 = inlined_call_operand.vmem [shape: f32[8,32], index: 0, kind: input, shape index: {}]
  %s1 = inlined_call_operand.vmem [shape: s32[8,1], index: 1, kind: input, shape index: {}]
  %s2 = inlined_call_operand.hbm [shape: f32[1,1], index: 2, kind: output, shape index: {}]
  %s3 = sld [smem:[#allocation0]]
  $region26: #{tpu_custom_call.1} parent=0
    _
  %s5 = ssub.s32 1, %s3
  %s6 = scalar_select 0, %s5, %s3
  $region1: #{tpu_custom_call.1} parent=0
    #allocation4 [shape = 'u8[512]{0}', space=vmem, size = 0x400, scoped, tag = 'output window, operand 0, single buffered']
    #allocation5 [shape = 's32[1]{0}', space=sflag, size = 0x4, scoped, tag = 'scoped memory for tpu_custom_call.1']
    %7 = vsyncpa [#allocation5], 0
    // Predicated region
    $region2: #{tpu_custom_call.1} parent=1 // pred_check
      _
    $region3: #{tpu_custom_call.1} parent=1 // pred_check_branch
      %9 = sbr.rel (0) target = $region5
    $region4: #{tpu_custom_call.1} parent=1 // pred_region
      _
    $region5: #{tpu_custom_call.1} parent=1 // pred_fallthru
      _
    // Predicated region
    $region6: #{tpu_custom_call.1} parent=1 // pred_check
      _
    $region7: #{tpu_custom_call.1} parent=1 // pred_check_branch
      %11 = sbr.rel (0) target = $region9
    $region8: #{tpu_custom_call.1} parent=1 // pred_region
      _
    $region9: #{tpu_custom_call.1} parent=1 // pred_fallthru
      _
    %p12 = scmp.eq.s32.totalorder 0, 0
    // Predicated region
    $region10: #{tpu_custom_call.1} parent=1 // pred_check
      %p13 = pneg %p12
    $region11: #{tpu_custom_call.1} parent=1 // pred_check_branch
      %15 = sbr.rel (%p13) target = $region13
    $region12: #{tpu_custom_call.1} parent=1 // pred_region
      %vm16 = vcmask 0
      %17 = vst.msk [vmem:[#allocation2] sm:$0x1] %vm16, 0.0
      %18 = vst.msk [vmem:[#allocation3] sm:$0x1] %vm16, 0.0
    $region13: #{tpu_custom_call.1} parent=1 // pred_fallthru
      _
    %v19 = vld [vmem:[%s0] sm:$0xff]
    %v20 = vld [vmem:[%s1] sm:$0xff]
    %vm21 = vcmask 261120
    %v22 = vsel %vm21, %v19, -inf
    %23 = vmax.xlane.f32.xlu0 %v22
    %v24 = vpop.xlane.xlu0 %23
    %v25 = vsub.f32 %v19, %v24
    %v26 = vmul.f32 %v25, 1.442695
    %v27 = vpow.pop %v26
    %v28 = vsel %vm21, %v27, 0.0
    %29 = vadd.xlane.f32.xlu0 %v28
    %v30 = vpop.xlane.xlu0 %29
    %v31 = vmul.f32 %v27, %v25
    %v32 = vsel %vm21, %v31, 0.0
    %33 = vadd.xlane.f32.xlu0 %v32
    %v34 = vpop.xlane.xlu0 %33
    %v35 = vlaneseq
    %v36 = vand.u32 %v35, 127
    %37 = vset.pattern.permute.xlu0 0
    %38 = vperm.xlu0 %37, %v20
    %v39 = vpop.permute.xlu0 %38
    %vm40 = vcmp.eq.s32.totalorder %v36, %v39
    %v41 = vsel %vm40, %v25, 0.0
    %v42 = vsel %vm21, %v41, 0.0
    %43 = vadd.xlane.f32.xlu0 %v42
    %v44 = vpop.xlane.xlu0 %43
    %v45 = vlog2.pop %v30
    %v46 = vmul.f32 %v45, 0.6931472
    %v47 = vrcp.pop %v30
    %v48 = vmul.f32 %v34, %v47
    %v49 = vsub.f32 %v46, %v48
    %v50 = vsub.f32 %v46, %v44
    %v51 = vlaneseq
    %v52 = vshrl.u32 %v51, 7
    %s53 = smul.u32 0, 8
    %v54 = vstv %s53
    %v55 = vadd.s32 %v54, %v52
    %vm56 = vcmp.lt.s32.totalorder %v55, 8
    %v57 = vsel %vm56, %v49, 0.0
    %v58 = vsel %vm56, %v50, 0.0
    %v59 = vld [vmem:[#allocation2] sm:$0x1]
    %vm60 = vcmask 7168
    %v61 = vsel %vm60, %v58, 0.0
    %62 = vadd.xlane.f32.xlu0 %v61
    %v63 = vpop.xlane.xlu0 %62
    %v64 = vrot.slane %v63, 4
    %v65 = vadd.f32 %v63, %v64
    %v66 = vrot.slane %v65, 2
    %v67 = vadd.f32 %v65, %v66
    %v68 = vrot.slane %v67, 1
    %v69 = vadd.f32 %v67, %v68
    %s70 = vtos %v69
    %v71 = vstv %s70
    %v72 = vadd.f32 %v59, %v71
    %vm73 = vcmask 0
    %74 = vst.msk [vmem:[#allocation2] sm:$0x1] %vm73, %v72
    %v75 = vld [vmem:[#allocation3] sm:$0x1]
    %v76 = vsel %vm60, %v57, 0.0
    %77 = vadd.xlane.f32.xlu0 %v76
    %v78 = vpop.xlane.xlu0 %77
    %v79 = vrot.slane %v78, 4
    %v80 = vadd.f32 %v78, %v79
    %v81 = vrot.slane %v80, 2
    %v82 = vadd.f32 %v80, %v81
    %v83 = vrot.slane %v82, 1
    %v84 = vadd.f32 %v82, %v83
    %s85 = vtos %v84
    %v86 = vstv %s85
    %v87 = vadd.f32 %v75, %v86
    %88 = vst.msk [vmem:[#allocation3] sm:$0x1] %vm73, %v87
    // Predicated region
    $region14: #{tpu_custom_call.1} parent=1 // pred_check
      %p89 = pneg %p12
    $region15: #{tpu_custom_call.1} parent=1 // pred_check_branch
      %91 = sbr.rel (%p89) target = $region17
    $region16: #{tpu_custom_call.1} parent=1 // pred_region
      %v92 = vld [vmem:[#allocation2] sm:$0x1]
      %v93 = vrcp.pop 8.0
      %v94 = vmul.f32 %v92, %v93
      %v95 = vld [vmem:[#allocation3] sm:$0x1]
      %v96 = vmul.f32 %v95, 0.001
      %v97 = vsub.f32 %v94, %v96
      %v98 = vmax.f32 %v97, 0.0
      %99 = vst.msk [vmem:[#allocation4] sm:$0x1] %vm73, %v98
    $region17: #{tpu_custom_call.1} parent=1 // pred_fallthru
      _
    // Predicated region
    $region18: #{tpu_custom_call.1} parent=1 // pred_check
      _
    $region19: #{tpu_custom_call.1} parent=1 // pred_check_branch
      %101 = sbr.rel (0) target = $region21
    $region20: #{tpu_custom_call.1} parent=1 // pred_region
      %s103 = ssub.s32 16, 16
      %104 = vsyncadd [#allocation5], %s103
      %s106 = sshll.u32 [#allocation4], 4
      %s107 = int_to_ptr.vmem [resolvable:$true] %s106
      %109 = dma.vmem_to_hbm [thread:$0]  %s107, 16, %s2, [#allocation5]
    $region21: #{tpu_custom_call.1} parent=1 // pred_fallthru
      _
    // Predicated region
    $region22: #{tpu_custom_call.1} parent=1 // pred_check
      _
    $region23: #{tpu_custom_call.1} parent=1 // pred_check_branch
      %111 = sbr.rel (0) target = $region25
    $region24: #{tpu_custom_call.1} parent=1 // pred_region
      %112 = dma.done [#allocation5], 16
    $region25: #{tpu_custom_call.1} parent=1 // pred_fallthru
      _
    %113 = vsyncpa [#allocation5], 1

</llo_original>
